<compile_context>
chip_gen: v7x
topology: tpu7x:2x2x1
jax: 0.10.0
libtpu: 0.0.40
codegen_flags: <defaults>
</compile_context>

<pallas_src>
import jax
import jax.numpy as jnp
from jax.experimental import pallas as pl
from jax.experimental.pallas import tpu as pltpu


def _make_dsc_kernel(K, pad, TL, L_total, ragged, tile_axis):
    def kernel(x_ref, halo_ref, wk_ref, b_ref, o_ref):
        # x_ref   : (R_in,  TL)           current L-tile, Nb batches stacked on sublanes
        # halo_ref: (1, 1, R_in, 2*pad)   [left | right] halo columns (zeros at edges)
        # wk_ref  : (K, R_out, R_in)      fused block-diagonal weights Wk = wp*wd[k]
        # b_ref   : (R_out, 1)            effective bias (Wp@bd + bp), f32
        # o_ref   : (R_out, TL)
        x = x_ref[...]                                            # (R_in, TL)
        if ragged:
            # Only generated when L % TL != 0: zero the columns past L so the
            # clipped last input block cannot leak garbage into the taps.
            j = pl.program_id(tile_axis)
            valid = L_total - j * TL                              # >= TL except last tile
            lane = jax.lax.broadcasted_iota(jnp.int32, x.shape, 1)
            x = jnp.where(lane < valid, x, jnp.zeros((), x.dtype))

        halo = halo_ref[0, 0]                                     # (R_in, 2*pad)
        # Haloed tile as a value (no VMEM scratch store/reload).
        xh = jnp.concatenate([halo[:, :pad], x, halo[:, pad:]], axis=1)  # (R_in, TL+2*pad)

        wk = wk_ref[...]                                          # load once (tiny)
        acc = jnp.zeros((o_ref.shape[0], TL), jnp.float32)
        for k in range(K):                                        # K small, static unroll
            acc = acc + jnp.dot(wk[k],
                                xh[:, k:k + TL].astype(wk.dtype),
                                preferred_element_type=jnp.float32)
        o_ref[...] = (acc + b_ref[...]).astype(o_ref.dtype)

    return kernel


def _vmem_capacity_bytes(default=64 << 20):
    try:
        info = pltpu.get_tpu_info()
        for name in ("vmem_capacity_bytes", "vmem_size_bytes", "vmem_bytes"):
            v = getattr(info, name, None)
            if v:
                return int(v)
    except Exception:
        pass
    return default            # conservative: v7x per-TC VMEM


def _choose_nb(N, Cin, Cout, itemsize):
    """Batch-packing factor so Nb*Cin and Nb*Cout fill sublanes (multiple of 8/16)."""
    sub = 8 if itemsize >= 4 else (16 if itemsize == 2 else 32)
    for nb in range(1, N + 1):
        if N % nb:
            continue
        if (nb * Cin) % sub == 0 and (nb * Cout) % sub == 0:
            return nb
    return N                  # full-batch block: block dims == full array dims (always legal)


def _choose_tile_len(L, R_in, R_out, itemsize, budget_bytes, lane_cap=32768):
    """Largest lane-dense L tile whose per-step VMEM footprint fits the budget."""
    per_col = itemsize * (4 * R_in + 2 * R_out) + 8 * R_out
    tl = budget_bytes // max(per_col, 1)
    tl = min(int(tl), lane_cap)
    tl = max(128, (tl // 128) * 128)
    return int(min(L, tl))


def dsc_forward(x_ncl, depth_w, depth_b, point_w, point_b,
                kernel_size=3, padding=1, mxu_dtype=None):
    """x_ncl: (N, Cin, L) like PyTorch Conv1d input. Returns (N, Cout, L).

    mxu_dtype: optional matmul operand dtype (e.g. jnp.bfloat16 on v5e for f32
    activations — a deliberate precision trade). Default: x's dtype (exact path).
    """
    N, Cin, L = x_ncl.shape
    Cout = point_w.shape[0]
    K, pad = kernel_size, padding
    assert 2 * pad == K - 1 and pad >= 1, \
        "stride=1 'same' padding assumed (DSC module defaults: K=3, pad=1)"

    dtype = x_ncl.dtype
    itemsize = jnp.dtype(dtype).itemsize
    w_dtype = jnp.dtype(mxu_dtype) if mxu_dtype is not None else jnp.dtype(dtype)
    w_itemsize = w_dtype.itemsize

    # --- sublane packing: Nb batches per grid step ---
    Nb = _choose_nb(N, Cin, Cout, itemsize)
    G = N // Nb
    R_in, R_out = Nb * Cin, Nb * Cout

    # --- VMEM-capacity-aware tile length ---
    cap_bytes = _vmem_capacity_bytes()
    budget = (48 << 20) if cap_bytes >= (100 << 20) else (20 << 20)   # v5e/v6e vs v7x
    TL = _choose_tile_len(L, R_in, R_out, itemsize, budget)
    T = pl.cdiv(L, TL)
    ragged = (L % TL) != 0

    # --- 2-D views (contiguous reshapes; no data movement) ---
    x2 = x_ncl.reshape(N * Cin, L)

    # --- fused weights Wk[o,c] = wp[o,c]*wd[c,k], block-diagonal over Nb ---
    wd = depth_w.reshape(Cin, K).astype(jnp.float32)
    wp = point_w.reshape(Cout, Cin).astype(jnp.float32)
    wk_small = wp[None, :, :] * jnp.transpose(wd)[:, None, :]          # (K, Cout, Cin)
    eye = jnp.eye(Nb, dtype=jnp.float32)
    wk_blk = (wk_small[:, None, :, None, :] * eye[None, :, None, :, None]
              ).reshape(K, R_out, R_in).astype(w_dtype)

    # Fold depthwise bias into the pointwise bias: Wp @ bd + bp, tiled over Nb.
    b_eff = wp @ depth_b.astype(jnp.float32) + point_b.astype(jnp.float32)   # (Cout,)
    b_eff = jnp.tile(b_eff, (Nb,)).reshape(R_out, 1)

    # --- merged [left|right] halo side array: (G, T, R_in, 2*pad), one DMA/step ---
    starts = jnp.arange(T, dtype=jnp.int32) * TL
    off = jnp.arange(pad, dtype=jnp.int32)
    cols = jnp.concatenate([starts[:, None] - pad + off[None, :],
                            starts[:, None] + TL + off[None, :]], axis=1)    # (T, 2*pad)
    in_range = (cols >= 0) & (cols < L)
    colsc = jnp.clip(cols, 0, L - 1)
    halo = x2[:, colsc]                                                       # (N*Cin, T, 2p)
    halo = jnp.where(in_range[None], halo, jnp.zeros((), dtype))
    halo = halo.reshape(G, R_in, T, 2 * pad).transpose(0, 2, 1, 3)            # (G, T, R_in, 2p)

    # --- honest per-step VMEM accounting (double-buffered blocks + f32 temps) ---
    per_step = (2 * (R_in * TL + R_out * TL + R_in * 2 * pad) * itemsize      # in/out/halo blocks
                + 2 * (K * R_out * R_in * w_itemsize + R_out * 4)             # weights + bias
                + R_in * (TL + 2 * pad) * itemsize                            # haloed-tile value
                + R_in * TL * w_itemsize                                      # one shifted operand
                + 2 * R_out * TL * 4)                                         # f32 acc + pre-cast out
    vmem_limit = int(min(cap_bytes - (16 << 20),
                         max(2 * per_step + (8 << 20), 32 << 20)))

    flops = int(N * L * (2 * K * Cin * Cout + Cout))
    bytes_accessed = int((x2.size + N * Cout * L + halo.size) * itemsize
                         + wk_blk.size * w_itemsize + b_eff.size * 4)

    # --- grid: larger extent first so both TCs (v7x) get balanced work ---
    if T >= G:
        grid = (T, G)
        to_gt = lambda a, b: (b, a)        # (group, tile)
        tile_axis = 0
    else:
        grid = (G, T)
        to_gt = lambda a, b: (a, b)
        tile_axis = 1

    kernel = _make_dsc_kernel(K, pad, TL, L, ragged, tile_axis)

    out2 = pl.pallas_call(
        kernel,
        out_shape=jax.ShapeDtypeStruct((N * Cout, L), dtype),
        grid_spec=pltpu.PrefetchScalarGridSpec(
            num_scalar_prefetch=0,
            grid=grid,
            in_specs=[
                pl.BlockSpec((R_in, TL), lambda a, b: to_gt(a, b)),
                pl.BlockSpec((1, 1, R_in, 2 * pad), lambda a, b: to_gt(a, b) + (0, 0)),
                pl.BlockSpec((K, R_out, R_in), lambda a, b: (0, 0, 0)),
                pl.BlockSpec((R_out, 1), lambda a, b: (0, 0)),
            ],
            out_specs=pl.BlockSpec((R_out, TL), lambda a, b: to_gt(a, b)),
        ),
        compiler_params=pltpu.CompilerParams(
            dimension_semantics=("parallel", "parallel"),
            vmem_limit_bytes=vmem_limit),
        cost_estimate=pl.CostEstimate(
            flops=flops, transcendentals=0, bytes_accessed=bytes_accessed),
    )(x2, halo, wk_blk, b_eff)

    return out2.reshape(N, Cout, L)


def dsc_reference(x_ncl, depth_w, depth_b, point_w, point_b,
                  kernel_size=3, padding=1):
    """Pure-JAX reference mirroring PyTorch Conv1d semantics."""
    N, Cin, L = x_ncl.shape
    K = kernel_size
    xpad = jnp.pad(x_ncl, ((0, 0), (0, 0), (padding, padding)))
    y = sum(xpad[:, :, k:k + L] * depth_w[None, :, 0, k][..., None]
            for k in range(K)) + depth_b[None, :, None]
    out = jnp.einsum('ncl,oc->nol', y, point_w[:, :, 0]) + point_b[None, :, None]
    return out


if __name__ == "__main__":
    key = jax.random.PRNGKey(0)
    N, Cin, Cout, L = 2, 4, 8, 16
    K, pad = 3, 1

    k1, k2, k3, k4, k5 = jax.random.split(key, 5)
    x = jax.random.normal(k1, (N, Cin, L), dtype=jnp.float32)
    depth_w = jax.random.normal(k2, (Cin, 1, K), dtype=jnp.float32) * 0.1
    depth_b = jax.random.normal(k3, (Cin,), dtype=jnp.float32) * 0.1
    point_w = jax.random.normal(k4, (Cout, Cin, 1), dtype=jnp.float32) * 0.1
    point_b = jax.random.normal(k5, (Cout,), dtype=jnp.float32) * 0.1

    out = dsc_forward(x, depth_w, depth_b, point_w, point_b, K, pad)
    out = jax.block_until_ready(out)

    ref = dsc_reference(x, depth_w, depth_b, point_w, point_b, K, pad)
    assert out.shape == (N, Cout, L)
    assert jnp.allclose(out, ref, atol=1e-5, rtol=1e-5), "mismatch vs reference"

    print("KERNEL_OK")
</pallas_src>

<mosaic_0001>
module attributes {stable_mosaic.version = 11 : i64} {
  func.func @kernel(%arg0: i32, %arg1: i32, %arg2: memref<8x16xf32, #tpu.memory_space<vmem>>, %arg3: memref<1x1x8x2xf32, #tpu.memory_space<vmem>>, %arg4: memref<3x16x8xf32, #tpu.memory_space<vmem>>, %arg5: memref<16x1xf32, #tpu.memory_space<vmem>>, %arg6: memref<16x16xf32, #tpu.memory_space<vmem>>) attributes {dimension_semantics = [#tpu.dimension_semantics<parallel>, #tpu.dimension_semantics<parallel>], iteration_bounds = array<i64: 1, 1>, scalar_prefetch = 0 : i64, scratch_operands = 0 : i64, tpu.core_type = #tpu.core_type<tc>, window_params = [{transform_indices = @transform_0, window_bounds = array<i64: 8, 16>}, {transform_indices = @transform_1, window_bounds = array<i64: 1, 1, 8, 2>}, {pipeline_mode = #tpu.pipeline_mode<synchronous>, transform_indices = @transform_2, window_bounds = array<i64: 3, 16, 8>}, {pipeline_mode = #tpu.pipeline_mode<synchronous>, transform_indices = @transform_3, window_bounds = array<i64: 16, 1>}, {transform_indices = @transform_4, window_bounds = array<i64: 16, 16>}]} {
    %c0 = arith.constant 0 : index
    %c0_0 = arith.constant 0 : index
    %0 = vector.load %arg2[%c0, %c0_0] : memref<8x16xf32, #tpu.memory_space<vmem>>, vector<8x16xf32>
    %c0_1 = arith.constant 0 : index
    %c0_2 = arith.constant 0 : index
    %c0_3 = arith.constant 0 : index
    %c0_4 = arith.constant 0 : index
    %1 = vector.load %arg3[%c0_1, %c0_2, %c0_3, %c0_4] : memref<1x1x8x2xf32, #tpu.memory_space<vmem>>, vector<1x1x8x2xf32>
    %2 = vector.shape_cast %1 : vector<1x1x8x2xf32> to vector<8x2xf32>
    %3 = vector.extract_strided_slice %2 {offsets = [0, 0], sizes = [8, 1], strides = [1, 1]} : vector<8x2xf32> to vector<8x1xf32>
    %4 = vector.extract_strided_slice %2 {offsets = [0, 1], sizes = [8, 1], strides = [1, 1]} : vector<8x2xf32> to vector<8x1xf32>
    %5 = tpu.concatenate %3, %0, %4 in 1 : vector<8x1xf32>, vector<8x16xf32>, vector<8x1xf32> -> vector<8x18xf32>
    %c0_5 = arith.constant 0 : index
    %c0_6 = arith.constant 0 : index
    %c0_7 = arith.constant 0 : index
    %6 = vector.load %arg4[%c0_5, %c0_6, %c0_7] : memref<3x16x8xf32, #tpu.memory_space<vmem>>, vector<3x16x8xf32>
    %cst = arith.constant 0.000000e+00 : f32
    %7 = vector.broadcast %cst : f32 to vector<16x16xf32>
    %8 = vector.extract_strided_slice %6 {offsets = [0, 0, 0], sizes = [1, 16, 8], strides = [1, 1, 1]} : vector<3x16x8xf32> to vector<1x16x8xf32>
    %9 = vector.shape_cast %8 : vector<1x16x8xf32> to vector<16x8xf32>
    %10 = vector.extract_strided_slice %5 {offsets = [0, 0], sizes = [8, 16], strides = [1, 1]} : vector<8x18xf32> to vector<8x16xf32>
    %cst_8 = arith.constant dense<0.000000e+00> : vector<16x16xf32>
    %11 = tpu.matmul %9, %10, %cst_8 {dimension_numbers = #tpu.dot_dimension_numbers<[1], [0], [0], [1], [0, 0, 1, 1], [], []>} : vector<16x8xf32>, vector<8x16xf32>, vector<16x16xf32> -> vector<16x16xf32>
    %12 = arith.addf %7, %11 : vector<16x16xf32>
    %13 = vector.extract_strided_slice %6 {offsets = [1, 0, 0], sizes = [1, 16, 8], strides = [1, 1, 1]} : vector<3x16x8xf32> to vector<1x16x8xf32>
    %14 = vector.shape_cast %13 : vector<1x16x8xf32> to vector<16x8xf32>
    %15 = vector.extract_strided_slice %5 {offsets = [0, 1], sizes = [8, 16], strides = [1, 1]} : vector<8x18xf32> to vector<8x16xf32>
    %cst_9 = arith.constant dense<0.000000e+00> : vector<16x16xf32>
    %16 = tpu.matmul %14, %15, %cst_9 {dimension_numbers = #tpu.dot_dimension_numbers<[1], [0], [0], [1], [0, 0, 1, 1], [], []>} : vector<16x8xf32>, vector<8x16xf32>, vector<16x16xf32> -> vector<16x16xf32>
    %17 = arith.addf %12, %16 : vector<16x16xf32>
    %18 = vector.extract_strided_slice %6 {offsets = [2, 0, 0], sizes = [1, 16, 8], strides = [1, 1, 1]} : vector<3x16x8xf32> to vector<1x16x8xf32>
    %19 = vector.shape_cast %18 : vector<1x16x8xf32> to vector<16x8xf32>
    %20 = vector.extract_strided_slice %5 {offsets = [0, 2], sizes = [8, 16], strides = [1, 1]} : vector<8x18xf32> to vector<8x16xf32>
    %cst_10 = arith.constant dense<0.000000e+00> : vector<16x16xf32>
    %21 = tpu.matmul %19, %20, %cst_10 {dimension_numbers = #tpu.dot_dimension_numbers<[1], [0], [0], [1], [0, 0, 1, 1], [], []>} : vector<16x8xf32>, vector<8x16xf32>, vector<16x16xf32> -> vector<16x16xf32>
    %22 = arith.addf %17, %21 : vector<16x16xf32>
    %c0_11 = arith.constant 0 : index
    %c0_12 = arith.constant 0 : index
    %23 = vector.load %arg5[%c0_11, %c0_12] : memref<16x1xf32, #tpu.memory_space<vmem>>, vector<16x1xf32>
    %24 = vector.broadcast %23 : vector<16x1xf32> to vector<16x16xf32>
    %25 = arith.addf %22, %24 : vector<16x16xf32>
    %c0_13 = arith.constant 0 : index
    %c0_14 = arith.constant 0 : index
    %26 = vector.load %arg6[%c0_13, %c0_14] : memref<16x16xf32, #tpu.memory_space<vmem>>, vector<16x16xf32>
    tpu.vector_store %arg6[%c0_13, %c0_14], %25 {strides = array<i32>} : memref<16x16xf32, #tpu.memory_space<vmem>>, vector<16x16xf32>,
    return
  }
  func.func @transform_0(%arg0: i32, %arg1: i32) -> (i32, i32) {
    %c0_i32 = arith.constant 0 : i32
    return %arg1, %arg0 : i32, i32
  }
  func.func @transform_1(%arg0: i32, %arg1: i32) -> (i32, i32, i32, i32) {
    %c0_i32 = arith.constant 0 : i32
    %c0_i32_0 = arith.constant 0 : i32
    %c0_i32_1 = arith.constant 0 : i32
    return %arg1, %arg0, %c0_i32, %c0_i32_0 : i32, i32, i32, i32
  }
  func.func @transform_2(%arg0: i32, %arg1: i32) -> (i32, i32, i32) {
    %c0_i32 = arith.constant 0 : i32
    %c0_i32_0 = arith.constant 0 : i32
    %c0_i32_1 = arith.constant 0 : i32
    %c0_i32_2 = arith.constant 0 : i32
    return %c0_i32, %c0_i32_0, %c0_i32_1 : i32, i32, i32
  }
  func.func @transform_3(%arg0: i32, %arg1: i32) -> (i32, i32) {
    %c0_i32 = arith.constant 0 : i32
    %c0_i32_0 = arith.constant 0 : i32
    %c0_i32_1 = arith.constant 0 : i32
    return %c0_i32, %c0_i32_0 : i32, i32
  }
  func.func @transform_4(%arg0: i32, %arg1: i32) -> (i32, i32) {
    %c0_i32 = arith.constant 0 : i32
    return %arg1, %arg0 : i32, i32
  }
}

</mosaic_0001>

<llo_original>
// kernel: tpu_custom_call.1
$region0: #{tpu_custom_call.1}
  #allocation0 [shape = 'u32[]', space=smem, size = 0x4, offset = 0x4, fixed_abs, tag = 'smem constant byte address 0x4 - core index']
  #allocation1 [shape = 'u32[144,128]{1,0:T(1,128)}', space=vmem, size = 0x12000, scoped, tag = 'internal scratch']
  %s0 = inlined_call_operand.vmem [shape: f32[8,16], index: 0, kind: input, shape index: {}]
  %s1 = inlined_call_operand.vmem [shape: f32[1,1,8,2], index: 1, kind: input, shape index: {}]
  %s2 = inlined_call_operand.vmem [shape: f32[3,16,8], index: 2, kind: input, shape index: {}]
  %s3 = inlined_call_operand.vmem [shape: f32[16,1], index: 3, kind: input, shape index: {}]
  %s4 = inlined_call_operand.hbm [shape: f32[16,16], index: 4, kind: output, shape index: {}]
  %s5 = sld [smem:[#allocation0]]
  $region26: #{tpu_custom_call.1} parent=0
    _
  %s7 = ssub.s32 1, %s5
  %s8 = scalar_select 0, %s7, %s5
  $region1: #{tpu_custom_call.1} parent=0
    #allocation2 [shape = 'u8[8192]{0}', space=vmem, size = 0x2000, scoped, tag = 'output window, operand 0, single buffered']
    #allocation3 [shape = 's32[1]{0}', space=sflag, size = 0x4, scoped, tag = 'scoped memory for tpu_custom_call.1']
    %9 = vsyncpa [#allocation3], 0
    // Predicated region
    $region2: #{tpu_custom_call.1} parent=1 // pred_check
      _
    $region3: #{tpu_custom_call.1} parent=1 // pred_check_branch
      %11 = sbr.rel (0) target = $region5
    $region4: #{tpu_custom_call.1} parent=1 // pred_region
      _
    $region5: #{tpu_custom_call.1} parent=1 // pred_fallthru
      _
    // Predicated region
    $region6: #{tpu_custom_call.1} parent=1 // pred_check
      _
    $region7: #{tpu_custom_call.1} parent=1 // pred_check_branch
      %13 = sbr.rel (0) target = $region9
    $region8: #{tpu_custom_call.1} parent=1 // pred_region
      _
    $region9: #{tpu_custom_call.1} parent=1 // pred_fallthru
      _
    // Predicated region
    $region10: #{tpu_custom_call.1} parent=1 // pred_check
      _
    $region11: #{tpu_custom_call.1} parent=1 // pred_check_branch
      %15 = sbr.rel (0) target = $region13
    $region12: #{tpu_custom_call.1} parent=1 // pred_region
      _
    $region13: #{tpu_custom_call.1} parent=1 // pred_fallthru
      _
    // Predicated region
    $region14: #{tpu_custom_call.1} parent=1 // pred_check
      _
    $region15: #{tpu_custom_call.1} parent=1 // pred_check_branch
      %17 = sbr.rel (0) target = $region17
    $region16: #{tpu_custom_call.1} parent=1 // pred_region
      _
    $region17: #{tpu_custom_call.1} parent=1 // pred_fallthru
      _
    %v18 = vld [vmem:[%s0] sm:$0xff]
    %v19 = vld [vmem:[%s1] sm:$0xff]
    %21 = vrot.lane.b32.xlu0 %v18, 1
    %v22 = vpop.permute.xlu0 %21
    %25 = vrot.lane.b32.xlu0 %v19, 16
    %v26 = vpop.permute.xlu0 %25
    %vm28 = vcmask 7168
    %v29 = vsel %vm28, %v19, %v22
    %vm30 = vcmask 138240
    %v31 = vsel %vm30, %v29, %v26
    %v32 = vld [vmem:[%s2] sm:$0xff]
    %v33 = vld [vmem:[%s2 + $0x8] sm:$0xff]
    %v34 = vld [vmem:[%s2 + $0x10] sm:$0xff]
    %v35 = vld [vmem:[%s2 + $0x18] sm:$0xff]
    %v36 = vld [vmem:[%s2 + $0x20] sm:$0xff]
    %v37 = vld [vmem:[%s2 + $0x28] sm:$0xff]
    %39 = vrot.lane.b32.xlu0 %v31, 127
    %v40 = vpop.permute.xlu0 %39
    %vm42 = vcmask 64512
    %v44 = vsel %vm42, %v34, 0
    %v47 = vsel %vm42, %v35, 0
    %49 = vmatprep.subr.mxu0 0.0
    %50 = vmatpush1.msra.mxu0 %v40
    %51 = vmatprep.subr.mxu0 0.0
    %52 = vmatpush1.msra.mxu0 0.0
    %53 = vmatprep.subr.mxu0 0.0
    %54 = vmatpush1.msra.mxu0 0.0
    %55 = vmatprep.subr.mxu0 0.0
    %56 = vmatpush1.msra.mxu0 0.0
    %57 = vmatprep.subr.mxu0 0.0
    %58 = vmatpush1.msra.mxu0 0.0
    %59 = vmatprep.subr.mxu0 0.0
    %60 = vmatpush1.msra.mxu0 0.0
    %61 = vmatprep.subr.mxu0 0.0
    %62 = vmatpush1.msra.mxu0 0.0
    %63 = vmatprep.subr.mxu0 0.0
    %64 = vmatpush1.msra.mxu0 0.0
    %65 = vmatprep.subr.mxu0 0.0
    %66 = vmatpush1.msra.mxu0 0.0
    %67 = vmatprep.subr.mxu0 0.0
    %68 = vmatpush1.msra.mxu0 0.0
    %69 = vmatprep.subr.mxu0 0.0
    %70 = vmatpush1.msra.mxu0 0.0
    %71 = vmatprep.subr.mxu0 0.0
    %72 = vmatpush1.msra.mxu0 0.0
    %73 = vmatprep.subr.mxu0 0.0
    %74 = vmatpush1.msra.mxu0 0.0
    %75 = vmatprep.subr.mxu0 0.0
    %76 = vmatpush1.msra.mxu0 0.0
    %77 = vmatprep.subr.mxu0 0.0
    %78 = vmatpush1.msra.mxu0 0.0
    %79 = vmatprep.subr.mxu0 0.0
    %80 = vmatpush1.msra.mxu0 0.0
    %81 = vmatprep.subr.mxu0 0.0
    %82 = vmatpush1.msra.mxu0 0.0
    %83 = vmatprep.subr.mxu0 0.0
    %84 = vmatpush1.msra.mxu0 0.0
    %85 = vmatprep.subr.mxu0 0.0
    %86 = vmatpush1.msra.mxu0 0.0
    %87 = vmatprep.subr.mxu0 0.0
    %88 = vmatpush1.msra.mxu0 0.0
    %89 = vmatprep.subr.mxu0 0.0
    %90 = vmatpush1.msra.mxu0 0.0
    %91 = vmatprep.subr.mxu0 0.0
    %92 = vmatpush1.msra.mxu0 0.0
    %93 = vmatprep.subr.mxu0 0.0
    %94 = vmatpush1.msra.mxu0 0.0
    %95 = vmatprep.subr.mxu0 0.0
    %96 = vmatpush1.msra.mxu0 0.0
    %97 = vmatprep.subr.mxu0 0.0
    %98 = vmatpush1.msra.mxu0 0.0
    %99 = vmatprep.subr.mxu0 0.0
    %100 = vmatpush1.msra.mxu0 0.0
    %101 = vmatprep.subr.mxu0 0.0
    %102 = vmatpush1.msra.mxu0 0.0
    %103 = vmatprep.subr.mxu0 0.0
    %104 = vmatpush1.msra.mxu0 0.0
    %105 = vmatprep.subr.mxu0 0.0
    %106 = vmatpush1.msra.mxu0 0.0
    %107 = vmatprep.subr.mxu0 0.0
    %108 = vmatpush1.msra.mxu0 0.0
    %109 = vmatprep.subr.mxu0 0.0
    %110 = vmatpush1.msra.mxu0 0.0
    %111 = vmatprep.subr.mxu0 0.0
    %112 = vmatpush1.msra.mxu0 0.0
    %113 = vmatprep.mubr.f32.mxu0 0.0
    %114 = vmatmul.mubr.f32.gmra.mrb[0].mxu0 %v44
    %v115 = vpop.f32.mrb[0].mxu0
    %v116 = vadd.f32 0.0, %v115
    %v117 = vpop.f32.mrb[0].mxu0
    %118 = vmatprep.mubr.f32.mxu0 0.0
    %119 = vmatmul.mubr.f32.gmra.mrb[0].mxu0 %v47
    %v120 = vpop.f32.mrb[0].mxu0
    %v121 = vadd.f32 0.0, %v120
    %v122 = vpop.f32.mrb[0].mxu0
    %123 = vdwg.mxu0
    %v125 = vsel %vm42, %v32, 0
    %v128 = vsel %vm42, %v33, 0
    %130 = vmatprep.subr.mxu0 0.0
    %131 = vmatpush1.msra.mxu0 %v31
    %132 = vmatprep.subr.mxu0 0.0
    %133 = vmatpush1.msra.mxu0 0.0
    %134 = vmatprep.subr.mxu0 0.0
    %135 = vmatpush1.msra.mxu0 0.0
    %136 = vmatprep.subr.mxu0 0.0
    %137 = vmatpush1.msra.mxu0 0.0
    %138 = vmatprep.subr.mxu0 0.0
    %139 = vmatpush1.msra.mxu0 0.0
    %140 = vmatprep.subr.mxu0 0.0
    %141 = vmatpush1.msra.mxu0 0.0
    %142 = vmatprep.subr.mxu0 0.0
    %143 = vmatpush1.msra.mxu0 0.0
    %144 = vmatprep.subr.mxu0 0.0
    %145 = vmatpush1.msra.mxu0 0.0
    %146 = vmatprep.subr.mxu0 0.0
    %147 = vmatpush1.msra.mxu0 0.0
    %148 = vmatprep.subr.mxu0 0.0
    %149 = vmatpush1.msra.mxu0 0.0
    %150 = vmatprep.subr.mxu0 0.0
    %151 = vmatpush1.msra.mxu0 0.0
    %152 = vmatprep.subr.mxu0 0.0
    %153 = vmatpush1.msra.mxu0 0.0
    %154 = vmatprep.subr.mxu0 0.0
    %155 = vmatpush1.msra.mxu0 0.0
    %156 = vmatprep.subr.mxu0 0.0
    %157 = vmatpush1.msra.mxu0 0.0
    %158 = vmatprep.subr.mxu0 0.0
    %159 = vmatpush1.msra.mxu0 0.0
    %160 = vmatprep.subr.mxu0 0.0
    %161 = vmatpush1.msra.mxu0 0.0
    %162 = vmatprep.subr.mxu0 0.0
    %163 = vmatpush1.msra.mxu0 0.0
    %164 = vmatprep.subr.mxu0 0.0
    %165 = vmatpush1.msra.mxu0 0.0
    %166 = vmatprep.subr.mxu0 0.0
    %167 = vmatpush1.msra.mxu0 0.0
    %168 = vmatprep.subr.mxu0 0.0
    %169 = vmatpush1.msra.mxu0 0.0
    %170 = vmatprep.subr.mxu0 0.0
    %171 = vmatpush1.msra.mxu0 0.0
    %172 = vmatprep.subr.mxu0 0.0
    %173 = vmatpush1.msra.mxu0 0.0
    %174 = vmatprep.subr.mxu0 0.0
    %175 = vmatpush1.msra.mxu0 0.0
    %176 = vmatprep.subr.mxu0 0.0
    %177 = vmatpush1.msra.mxu0 0.0
    %178 = vmatprep.subr.mxu0 0.0
    %179 = vmatpush1.msra.mxu0 0.0
    %180 = vmatprep.subr.mxu0 0.0
    %181 = vmatpush1.msra.mxu0 0.0
    %182 = vmatprep.subr.mxu0 0.0
    %183 = vmatpush1.msra.mxu0 0.0
    %184 = vmatprep.subr.mxu0 0.0
    %185 = vmatpush1.msra.mxu0 0.0
    %186 = vmatprep.subr.mxu0 0.0
    %187 = vmatpush1.msra.mxu0 0.0
    %188 = vmatprep.subr.mxu0 0.0
    %189 = vmatpush1.msra.mxu0 0.0
    %190 = vmatprep.subr.mxu0 0.0
    %191 = vmatpush1.msra.mxu0 0.0
    %192 = vmatprep.subr.mxu0 0.0
    %193 = vmatpush1.msra.mxu0 0.0
    %194 = vmatprep.mubr.f32.mxu0 0.0
    %195 = vmatmul.mubr.f32.gmra.mrb[0].mxu0 %v125
    %v196 = vpop.f32.mrb[0].mxu0
    %v197 = vadd.f32 %v116, %v196
    %v198 = vpop.f32.mrb[0].mxu0
    %199 = vmatprep.mubr.f32.mxu0 0.0
    %200 = vmatmul.mubr.f32.gmra.mrb[0].mxu0 %v128
    %v201 = vpop.f32.mrb[0].mxu0
    %v202 = vadd.f32 %v121, %v201
    %v203 = vpop.f32.mrb[0].mxu0
    %204 = vdwg.mxu0
    %205 = vrot.lane.b32.xlu0 %v31, 126
    %v206 = vpop.permute.xlu0 %205
    %v209 = vsel %vm42, %v36, 0
    %v212 = vsel %vm42, %v37, 0
    %214 = vmatprep.subr.mxu0 0.0
    %215 = vmatpush1.msra.mxu0 %v206
    %216 = vmatprep.subr.mxu0 0.0
    %217 = vmatpush1.msra.mxu0 0.0
    %218 = vmatprep.subr.mxu0 0.0
    %219 = vmatpush1.msra.mxu0 0.0
    %220 = vmatprep.subr.mxu0 0.0
    %221 = vmatpush1.msra.mxu0 0.0
    %222 = vmatprep.subr.mxu0 0.0
    %223 = vmatpush1.msra.mxu0 0.0
    %224 = vmatprep.subr.mxu0 0.0
    %225 = vmatpush1.msra.mxu0 0.0
    %226 = vmatprep.subr.mxu0 0.0
    %227 = vmatpush1.msra.mxu0 0.0
    %228 = vmatprep.subr.mxu0 0.0
    %229 = vmatpush1.msra.mxu0 0.0
    %230 = vmatprep.subr.mxu0 0.0
    %231 = vmatpush1.msra.mxu0 0.0
    %232 = vmatprep.subr.mxu0 0.0
    %233 = vmatpush1.msra.mxu0 0.0
    %234 = vmatprep.subr.mxu0 0.0
    %235 = vmatpush1.msra.mxu0 0.0
    %236 = vmatprep.subr.mxu0 0.0
    %237 = vmatpush1.msra.mxu0 0.0
    %238 = vmatprep.subr.mxu0 0.0
    %239 = vmatpush1.msra.mxu0 0.0
    %240 = vmatprep.subr.mxu0 0.0
    %241 = vmatpush1.msra.mxu0 0.0
    %242 = vmatprep.subr.mxu0 0.0
    %243 = vmatpush1.msra.mxu0 0.0
    %244 = vmatprep.subr.mxu0 0.0
    %245 = vmatpush1.msra.mxu0 0.0
    %246 = vmatprep.subr.mxu0 0.0
    %247 = vmatpush1.msra.mxu0 0.0
    %248 = vmatprep.subr.mxu0 0.0
    %249 = vmatpush1.msra.mxu0 0.0
    %250 = vmatprep.subr.mxu0 0.0
    %251 = vmatpush1.msra.mxu0 0.0
    %252 = vmatprep.subr.mxu0 0.0
    %253 = vmatpush1.msra.mxu0 0.0
    %254 = vmatprep.subr.mxu0 0.0
    %255 = vmatpush1.msra.mxu0 0.0
    %256 = vmatprep.subr.mxu0 0.0
    %257 = vmatpush1.msra.mxu0 0.0
    %258 = vmatprep.subr.mxu0 0.0
    %259 = vmatpush1.msra.mxu0 0.0
    %260 = vmatprep.subr.mxu0 0.0
    %261 = vmatpush1.msra.mxu0 0.0
    %262 = vmatprep.subr.mxu0 0.0
    %263 = vmatpush1.msra.mxu0 0.0
    %264 = vmatprep.subr.mxu0 0.0
    %265 = vmatpush1.msra.mxu0 0.0
    %266 = vmatprep.subr.mxu0 0.0
    %267 = vmatpush1.msra.mxu0 0.0
    %268 = vmatprep.subr.mxu0 0.0
    %269 = vmatpush1.msra.mxu0 0.0
    %270 = vmatprep.subr.mxu0 0.0
    %271 = vmatpush1.msra.mxu0 0.0
    %272 = vmatprep.subr.mxu0 0.0
    %273 = vmatpush1.msra.mxu0 0.0
    %274 = vmatprep.subr.mxu0 0.0
    %275 = vmatpush1.msra.mxu0 0.0
    %276 = vmatprep.subr.mxu0 0.0
    %277 = vmatpush1.msra.mxu0 0.0
    %278 = vmatprep.mubr.f32.mxu0 0.0
    %279 = vmatmul.mubr.f32.gmra.mrb[0].mxu0 %v209
    %v280 = vpop.f32.mrb[0].mxu0
    %v281 = vadd.f32 0.0, %v280
    %v282 = vpop.f32.mrb[0].mxu0
    %283 = vmatprep.mubr.f32.mxu0 0.0
    %284 = vmatmul.mubr.f32.gmra.mrb[0].mxu0 %v212
    %v285 = vpop.f32.mrb[0].mxu0
    %v286 = vadd.f32 0.0, %v285
    %v287 = vpop.f32.mrb[0].mxu0
    %288 = vdwg.mxu0
    %v289 = vadd.f32 %v197, %v281
    %v290 = vadd.f32 %v202, %v286
    %v291 = vld [vmem:[%s3] sm:$0xff]
    %v292 = vld [vmem:[%s3 + $0x8] sm:$0xff]
    %294 = vset.pattern.permute.xlu0 0
    %295 = vperm.xlu0 %294, %v291
    %v296 = vpop.permute.xlu0 %295
    %299 = vset.pattern.permute.xlu0 0
    %300 = vperm.xlu0 %299, %v292
    %v301 = vpop.permute.xlu0 %300
    %v303 = vadd.f32 %v289, %v296
    %v304 = vadd.f32 %v290, %v301
    %vm305 = vcmask 130048
    %306 = vst.msk [vmem:[#allocation2] sm:$0xff] %vm305, %v303
    %307 = vst.msk [vmem:[#allocation2 + $0x8] sm:$0xff] %vm305, %v304
    // Predicated region
    $region18: #{tpu_custom_call.1} parent=1 // pred_check
      _
    $region19: #{tpu_custom_call.1} parent=1 // pred_check_branch
      %309 = sbr.rel (0) target = $region21
    $region20: #{tpu_custom_call.1} parent=1 // pred_region
      %s311 = ssub.s32 256, 256
      %312 = vsyncadd [#allocation3], %s311
      %s313 = sshll.u32 [#allocation2], 4
      %s314 = int_to_ptr.vmem [resolvable:$true] %s313
      %319 = dma.vmem_to_hbm [thread:$0]  %s314, 256, %s4, [#allocation3], 128, 128, 8
    $region21: #{tpu_custom_call.1} parent=1 // pred_fallthru
      _
    // Predicated region
    $region22: #{tpu_custom_call.1} parent=1 // pred_check
      _
    $region23: #{tpu_custom_call.1} parent=1 // pred_check_branch
      %321 = sbr.rel (0) target = $region25
    $region24: #{tpu_custom_call.1} parent=1 // pred_region
      %322 = dma.done [#allocation3], 256
    $region25: #{tpu_custom_call.1} parent=1 // pred_fallthru
      _
    %323 = vsyncpa [#allocation3], 1

</llo_original>
